<compile_context>
chip_gen: v7x
topology: tpu7x:2x2x1
jax: 0.10.0
libtpu: 0.0.40
codegen_flags: <defaults>
</compile_context>

<pallas_src>
import functools

import jax
import jax.numpy as jnp
import numpy as np
from jax.experimental import pallas as pl
from jax.experimental.pallas import tpu as pltpu


def _round_up(n, m):
    return (n + m - 1) // m * m


_VMEM_LIMIT = 32 * 1024 * 1024  # explicit scoped-VMEM budget, safe on all gens


# ----------------------------------------------------------------------------
# Pallas kernels: (M, K) @ (K, N) + bias [+ ReLU]
# ----------------------------------------------------------------------------
def _matmul_bias_acc_kernel(x_ref, w_ref, b_ref, o_ref, acc_ref, *, relu):
    """K-tiled variant with f32 VMEM accumulator (grid = (nm, nk))."""
    @pl.when(pl.program_id(1) == 0)
    def _init():
        acc_ref[...] = jnp.zeros_like(acc_ref)

    acc_ref[...] += jnp.dot(x_ref[...], w_ref[...],
                            preferred_element_type=jnp.float32)

    @pl.when(pl.program_id(1) == pl.num_programs(1) - 1)
    def _finalize():
        out = acc_ref[...] + b_ref[...]
        if relu:
            out = jnp.maximum(out, 0.0)
        o_ref[...] = out.astype(o_ref.dtype)


def _matmul_bias_direct_kernel(x_ref, w_ref, b_ref, o_ref, *, relu):
    """Single-K-block variant: no accumulator round trip (grid = (nm,))."""
    out = jnp.dot(x_ref[...], w_ref[...],
                  preferred_element_type=jnp.float32) + b_ref[...]
    if relu:
        out = jnp.maximum(out, 0.0)
    o_ref[...] = out.astype(o_ref.dtype)


def pallas_matmul_bias(x, w, b, *, relu=False, tm=2048, tk=None,
                       out_dtype=jnp.bfloat16):
    """x: (M, K), w: (K, N) (bf16); b: (N,) f32  ->  (M, N) out_dtype.

    Only M is zero-padded (to a multiple of the M tile).  K and N ride at
    full block extent unless K-tiling is requested via `tk`, in which case K
    must already be a multiple of tk (FC weights are padded once at init).
    """
    M, K = x.shape
    K2, N = w.shape
    assert K == K2 and b.shape == (N,)

    tm = max(8, min(tm, _round_up(M, 8)))
    Mp = _round_up(M, tm)
    if Mp != M:
        x = jnp.pad(x, ((0, Mp - M), (0, 0)))

    if tk is None or tk >= K:
        tk, nk = K, 1                         # single full-extent K block
    else:
        assert tk % 128 == 0 and K % tk == 0, (K, tk)
        nk = K // tk
    nm = Mp // tm

    b2 = b.reshape(1, N).astype(jnp.float32)
    bytes_accessed = (Mp * K * np.dtype(x.dtype).itemsize
                      + K * N * np.dtype(w.dtype).itemsize
                      + N * 4
                      + Mp * N * np.dtype(out_dtype).itemsize)
    cost = pl.CostEstimate(flops=2 * Mp * K * N, transcendentals=0,
                           bytes_accessed=int(bytes_accessed))

    if nk == 1:
        out = pl.pallas_call(
            functools.partial(_matmul_bias_direct_kernel, relu=relu),
            out_shape=jax.ShapeDtypeStruct((Mp, N), out_dtype),
            grid_spec=pltpu.PrefetchScalarGridSpec(
                num_scalar_prefetch=0,
                grid=(nm,),
                in_specs=[
                    pl.BlockSpec((tm, K), lambda i: (i, 0)),
                    pl.BlockSpec((K, N), lambda i: (0, 0)),
                    pl.BlockSpec((1, N), lambda i: (0, 0)),
                ],
                out_specs=pl.BlockSpec((tm, N), lambda i: (i, 0)),
            ),
            compiler_params=pltpu.CompilerParams(
                dimension_semantics=("parallel",),
                vmem_limit_bytes=_VMEM_LIMIT),
            cost_estimate=cost,
        )(x, w, b2)
    else:
        out = pl.pallas_call(
            functools.partial(_matmul_bias_acc_kernel, relu=relu),
            out_shape=jax.ShapeDtypeStruct((Mp, N), out_dtype),
            grid_spec=pltpu.PrefetchScalarGridSpec(
                num_scalar_prefetch=0,
                grid=(nm, nk),
                in_specs=[
                    pl.BlockSpec((tm, tk), lambda i, k: (i, k)),
                    pl.BlockSpec((tk, N), lambda i, k: (k, 0)),
                    pl.BlockSpec((1, N), lambda i, k: (0, 0)),
                ],
                out_specs=pl.BlockSpec((tm, N), lambda i, k: (i, 0)),
                scratch_shapes=[pltpu.VMEM((tm, N), jnp.float32)],
            ),
            compiler_params=pltpu.CompilerParams(
                dimension_semantics=("parallel", "arbitrary"),
                vmem_limit_bytes=_VMEM_LIMIT),
            cost_estimate=cost,
        )(x, w, b2)
    return out[:M] if Mp != M else out


# ----------------------------------------------------------------------------
# im2col glue (plain JAX): NHWC -> (N*OH*OW, kh*kw*Cin), (tap, channel) order
# ----------------------------------------------------------------------------
def im2col(x, kh, kw, sh, sw):
    N, H, W, C = x.shape
    OH = (H - kh) // sh + 1
    OW = (W - kw) // sw + 1
    cols = []
    for i in range(kh):
        for j in range(kw):
            cols.append(
                x[:, i:i + sh * (OH - 1) + 1:sh, j:j + sw * (OW - 1) + 1:sw, :])
    p = jnp.concatenate(cols, axis=-1)              # (N, OH, OW, kh*kw*C)
    return p.reshape(N * OH * OW, kh * kw * C), OH, OW


# ----------------------------------------------------------------------------
# Model config / parameters
# ----------------------------------------------------------------------------
CONV_CFG = [
    # (Cout, Cin, kh, kw, stride)
    (24, 3, 5, 5, 2),
    (36, 24, 5, 5, 2),
    (48, 36, 5, 5, 2),
    (64, 48, 3, 3, 1),
    (64, 64, 3, 3, 1),
]


def conv_out_hw(h, w):
    for (_, _, kh, kw, s) in CONV_CFG:
        h = (h - kh) // s + 1
        w = (w - kw) // s + 1
    return h, w


def init_params(key, h, w):
    """PyTorch-layout f32 parameters (what the nn.Module would hold)."""
    params = {"convs": []}
    for (cout, cin, kh, kw, stride) in CONV_CFG:
        key, k1, k2 = jax.random.split(key, 3)
        fan_in = cin * kh * kw
        wgt = jax.random.normal(k1, (cout, cin, kh, kw), jnp.float32) / np.sqrt(fan_in)
        bia = jax.random.normal(k2, (cout,), jnp.float32) * 0.01
        params["convs"].append((wgt, bia, stride))
    oh, ow = conv_out_hw(h, w)
    to_linear = CONV_CFG[-1][0] * oh * ow
    key, k1, k2 = jax.random.split(key, 3)
    fc_w = jax.random.normal(k1, (100, to_linear), jnp.float32) / np.sqrt(to_linear)
    fc_b = jax.random.normal(k2, (100,), jnp.float32) * 0.01
    params["fc"] = (fc_w, fc_b)
    return params


def prepare_params(params, h, w, *, act_dtype=jnp.bfloat16, fc_tk=8192):
    """One-time conversion to kernel layouts (bf16 matmul weights).

    - Conv weights -> (kh*kw*Cin, Cout) matrices matching the im2col order.
    - FC weight columns permuted from NCHW-flatten to NHWC-flatten order,
      transposed to (K, 100) and K-padded once to a multiple of fc_tk, so the
      forward pass needs no feature-map transpose and no per-call fc_w.T.
    """
    prepared = {"convs": []}
    for (wgt, bia, stride) in params["convs"]:
        cout, cin, kh, kw = wgt.shape
        wmat = jnp.transpose(wgt, (2, 3, 1, 0)).reshape(kh * kw * cin, cout)
        prepared["convs"].append(
            (wmat.astype(act_dtype), bia.astype(jnp.float32), (kh, kw, stride)))

    fc_w, fc_b = params["fc"]                     # (100, C*OH*OW), NCHW order
    oh, ow = conv_out_hw(h, w)
    c_last = CONV_CFG[-1][0]
    w_nhwc = (fc_w.reshape(100, c_last, oh, ow)
                  .transpose(2, 3, 1, 0)          # (oh, ow, c, 100)
                  .reshape(oh * ow * c_last, 100))
    K = w_nhwc.shape[0]
    tk = fc_tk if K > fc_tk else None
    if tk is not None:
        Kp = _round_up(K, tk)
        if Kp != K:
            w_nhwc = jnp.pad(w_nhwc, ((0, Kp - K), (0, 0)))
    prepared["fc"] = (w_nhwc.astype(act_dtype), fc_b.astype(jnp.float32), tk)
    return prepared


# ----------------------------------------------------------------------------
# Forward pass (Pallas kernels + im2col glue)
# ----------------------------------------------------------------------------
def forward(x, prepared):
    """x: (B, T, C, H, W) f32 -> (B, T, 100) f32."""
    B, T, C, H, W = x.shape
    # NCHW -> NHWC, bf16 activations (f32 accumulation inside the kernel).
    y = x.reshape(B * T, C, H, W).transpose(0, 2, 3, 1).astype(jnp.bfloat16)

    for (wmat, bia, (kh, kw, stride)) in prepared["convs"]:
        patches, OH, OW = im2col(y, kh, kw, stride, stride)
        cout = wmat.shape[1]
        out = pallas_matmul_bias(patches, wmat, bia, relu=False, tm=2048,
                                 out_dtype=jnp.bfloat16)
        y = out.reshape(B * T, OH, OW, cout)

    # NHWC flatten (FC weight rows were permuted to match at prepare time).
    flat = y.reshape(B * T, -1)
    fc_w, fc_b, tk = prepared["fc"]
    Kp = fc_w.shape[0]
    if Kp != flat.shape[1]:
        # Only when nk > 1 and K % tk != 0 (< tk extra cols, ~1.5% of K).
        flat = jnp.pad(flat, ((0, 0), (0, Kp - flat.shape[1])))
    out = pallas_matmul_bias(flat, fc_w, fc_b, relu=True, tm=512, tk=tk,
                             out_dtype=jnp.float32)
    return out.reshape(B, T, -1)


# ----------------------------------------------------------------------------
# Pure-JAX f32 reference (module semantics) for correctness check
# ----------------------------------------------------------------------------
def ref_forward(x, params):
    B, T, C, H, W = x.shape
    y = x.reshape(B * T, C, H, W).transpose(0, 2, 3, 1)
    for (wgt, bia, stride) in params["convs"]:
        wr = jnp.transpose(wgt, (2, 3, 1, 0))     # HWIO
        y = jax.lax.conv_general_dilated(
            y, wr, (stride, stride), "VALID",
            dimension_numbers=("NHWC", "HWIO", "NHWC"),
            precision=jax.lax.Precision.HIGHEST) + bia
    flat = jnp.transpose(y, (0, 3, 1, 2)).reshape(B * T, -1)   # NCHW flatten
    fc_w, fc_b = params["fc"]
    out = jnp.maximum(
        jnp.dot(flat, fc_w.T, precision=jax.lax.Precision.HIGHEST) + fc_b, 0.0)
    return out.reshape(B, T, -1)


if __name__ == "__main__":
    # --- 1) Standalone check of the K-tiled accumulator path (the FC uses it
    #        at the production 360x640 shape where K ~ 177k). -----------------
    kt_key = jax.random.PRNGKey(1)
    ka, kb, kc = jax.random.split(kt_key, 3)
    km, kk, kn = 64, 2048, 100
    a = jax.random.normal(ka, (km, kk), jnp.float32).astype(jnp.bfloat16)
    wt = (jax.random.normal(kb, (kk, kn), jnp.float32) / np.sqrt(kk)
          ).astype(jnp.bfloat16)
    bb = jax.random.normal(kc, (kn,), jnp.float32) * 0.01
    got = jax.block_until_ready(
        jax.jit(lambda a_, w_, b_: pallas_matmul_bias(
            a_, w_, b_, relu=True, tm=64, tk=512, out_dtype=jnp.float32)
        )(a, wt, bb))
    want = jnp.maximum(
        jnp.dot(a.astype(jnp.float32), wt.astype(jnp.float32),
                precision=jax.lax.Precision.HIGHEST) + bb, 0.0)
    np.testing.assert_allclose(np.asarray(got), np.asarray(want),
                               rtol=3e-2, atol=3e-2)

    # --- 2) Full model at a small demo shape (96x96 keeps all 5 convs valid;
    #        the convs and small-K FC all take the direct nk==1 path). --------
    B, T, C, H, W = 2, 3, 3, 96, 96
    key = jax.random.PRNGKey(0)
    k_x, k_p = jax.random.split(key)
    x = jax.random.normal(k_x, (B, T, C, H, W), jnp.float32)

    params = init_params(k_p, H, W)
    prepared = prepare_params(params, H, W)

    fwd = jax.jit(lambda inp: forward(inp, prepared))
    out = jax.block_until_ready(fwd(x))
    assert out.shape == (B, T, 100), out.shape

    ref = jax.block_until_ready(ref_forward(x, params))
    # bf16 activations/weights (f32 accumulation) vs. f32 HIGHEST reference.
    np.testing.assert_allclose(np.asarray(out), np.asarray(ref),
                               rtol=3e-2, atol=3e-2)
    print("KERNEL_OK")
</pallas_src>

<mosaic_0001>
module attributes {stable_mosaic.version = 11 : i64} {
  func.func @_matmul_bias_acc_kernel(%arg0: i32, %arg1: i32, %arg2: memref<64x512xbf16, #tpu.memory_space<vmem>>, %arg3: memref<512x100xbf16, #tpu.memory_space<vmem>>, %arg4: memref<1x100xf32, #tpu.memory_space<vmem>>, %arg5: memref<64x100xf32, #tpu.memory_space<vmem>>, %arg6: memref<64x100xf32, #tpu.memory_space<vmem>>) attributes {dimension_semantics = [#tpu.dimension_semantics<parallel>, #tpu.dimension_semantics<arbitrary>], iteration_bounds = array<i64: 1, 4>, scalar_prefetch = 0 : i64, scratch_operands = 1 : i64, tpu.core_type = #tpu.core_type<tc>, window_params = [{transform_indices = @transform_0, window_bounds = array<i64: 64, 512>}, {transform_indices = @transform_1, window_bounds = array<i64: 512, 100>}, {pipeline_mode = #tpu.pipeline_mode<synchronous>, transform_indices = @transform_2, window_bounds = array<i64: 1, 100>}, {transform_indices = @transform_3, window_bounds = array<i64: 64, 100>}]} {
    %c0_i32 = arith.constant 0 : i32
    %0 = arith.cmpi eq, %arg1, %c0_i32 : i32
    %1 = arith.extui %0 : i1 to i32
    %c0_i32_0 = arith.constant 0 : i32
    %2 = arith.cmpi ne, %1, %c0_i32_0 : i32
    scf.if %2 {
      %cst_9 = arith.constant 0.000000e+00 : f32
      %12 = vector.broadcast %cst_9 : f32 to vector<64x100xf32>
      %c0_10 = arith.constant 0 : index
      %c0_11 = arith.constant 0 : index
      %13 = vector.load %arg6[%c0_10, %c0_11] : memref<64x100xf32, #tpu.memory_space<vmem>>, vector<64x100xf32>
      tpu.vector_store %arg6[%c0_10, %c0_11], %12 {strides = array<i32>} : memref<64x100xf32, #tpu.memory_space<vmem>>, vector<64x100xf32>,
    } else {
    }
    %c0 = arith.constant 0 : index
    %c0_1 = arith.constant 0 : index
    %3 = vector.load %arg6[%c0, %c0_1] : memref<64x100xf32, #tpu.memory_space<vmem>>, vector<64x100xf32>
    %c0_2 = arith.constant 0 : index
    %c0_3 = arith.constant 0 : index
    %4 = vector.load %arg2[%c0_2, %c0_3] : memref<64x512xbf16, #tpu.memory_space<vmem>>, vector<64x512xbf16>
    %c0_4 = arith.constant 0 : index
    %c0_5 = arith.constant 0 : index
    %5 = vector.load %arg3[%c0_4, %c0_5] : memref<512x100xbf16, #tpu.memory_space<vmem>>, vector<512x100xbf16>
    %cst = arith.constant dense<0.000000e+00> : vector<64x100xf32>
    %6 = tpu.matmul %4, %5, %cst {dimension_numbers = #tpu.dot_dimension_numbers<[1], [0], [0], [1], [0, 0, 1, 1], [], []>} : vector<64x512xbf16>, vector<512x100xbf16>, vector<64x100xf32> -> vector<64x100xf32>
    %7 = arith.addf %3, %6 : vector<64x100xf32>
    %c0_6 = arith.constant 0 : index
    %c0_7 = arith.constant 0 : index
    %8 = vector.load %arg6[%c0_6, %c0_7] : memref<64x100xf32, #tpu.memory_space<vmem>>, vector<64x100xf32>
    tpu.vector_store %arg6[%c0_6, %c0_7], %7 {strides = array<i32>} : memref<64x100xf32, #tpu.memory_space<vmem>>, vector<64x100xf32>,
    %c3_i32 = arith.constant 3 : i32
    %9 = arith.cmpi eq, %arg1, %c3_i32 : i32
    %10 = arith.extui %9 : i1 to i32
    %c0_i32_8 = arith.constant 0 : i32
    %11 = arith.cmpi ne, %10, %c0_i32_8 : i32
    scf.if %11 {
      %c0_9 = arith.constant 0 : index
      %c0_10 = arith.constant 0 : index
      %12 = vector.load %arg6[%c0_9, %c0_10] : memref<64x100xf32, #tpu.memory_space<vmem>>, vector<64x100xf32>
      %c0_11 = arith.constant 0 : index
      %c0_12 = arith.constant 0 : index
      %13 = vector.load %arg4[%c0_11, %c0_12] : memref<1x100xf32, #tpu.memory_space<vmem>>, vector<1x100xf32>
      %14 = vector.broadcast %13 : vector<1x100xf32> to vector<64x100xf32>
      %15 = arith.addf %12, %14 : vector<64x100xf32>
      %cst_13 = arith.constant 0.000000e+00 : f32
      %16 = vector.broadcast %cst_13 : f32 to vector<64x100xf32>
      %17 = arith.maximumf %15, %16 : vector<64x100xf32>
      %c0_14 = arith.constant 0 : index
      %c0_15 = arith.constant 0 : index
      %18 = vector.load %arg5[%c0_14, %c0_15] : memref<64x100xf32, #tpu.memory_space<vmem>>, vector<64x100xf32>
      tpu.vector_store %arg5[%c0_14, %c0_15], %17 {strides = array<i32>} : memref<64x100xf32, #tpu.memory_space<vmem>>, vector<64x100xf32>,
    } else {
    }
    return
  }
  func.func @transform_0(%arg0: i32, %arg1: i32) -> (i32, i32) {
    %c0_i32 = arith.constant 0 : i32
    return %arg0, %arg1 : i32, i32
  }
  func.func @transform_1(%arg0: i32, %arg1: i32) -> (i32, i32) {
    %c0_i32 = arith.constant 0 : i32
    %c0_i32_0 = arith.constant 0 : i32
    return %arg1, %c0_i32 : i32, i32
  }
  func.func @transform_2(%arg0: i32, %arg1: i32) -> (i32, i32) {
    %c0_i32 = arith.constant 0 : i32
    %c0_i32_0 = arith.constant 0 : i32
    %c0_i32_1 = arith.constant 0 : i32
    return %c0_i32, %c0_i32_0 : i32, i32
  }
  func.func @transform_3(%arg0: i32, %arg1: i32) -> (i32, i32) {
    %c0_i32 = arith.constant 0 : i32
    %c0_i32_0 = arith.constant 0 : i32
    return %arg0, %c0_i32 : i32, i32
  }
}

</mosaic_0001>

<llo_original>
// kernel: _lambda_.1
$region0: #{_lambda_.1}
  #allocation0 [shape = 'u32[]', space=smem, size = 0x4, offset = 0x4, fixed_abs, tag = 'smem constant byte address 0x4 - core index']
  #allocation1 [shape = 'u32[144,128]{1,0:T(1,128)}', space=vmem, size = 0x12000, scoped, tag = 'internal scratch']
  #allocation2 [shape = 'f32[64,100]{1,0:T(8,128)}', space=vmem, size = 0x8000, scoped, tag = 'scratch operand']
  %s0 = inlined_call_operand.vmem [shape: bf16[64,2048], index: 0, kind: input, shape index: {}]
  %s1 = inlined_call_operand.vmem [shape: bf16[2048,100], index: 1, kind: input, shape index: {}]
  %s2 = inlined_call_operand.vmem [shape: f32[1,100], index: 2, kind: input, shape index: {}]
  %s3 = inlined_call_operand.hbm [shape: f32[64,100], index: 3, kind: output, shape index: {}]
  %s4 = sld [smem:[#allocation0]]
  $region76: #{_lambda_.1} parent=0
    _
  %s6 = ssub.s32 1, %s4
  %s7 = scalar_select 0, %s6, %s4
  $region1: #{_lambda_.1} parent=0
    #allocation3 [shape = 'u8[131072]{0}', space=vmem, size = 0x20000, scoped, tag = 'input window, operand 0']
    #allocation4 [shape = 'u8[32768]{0}', space=vmem, size = 0x8000, scoped, tag = 'output window, operand 0, single buffered']
    #allocation5 [shape = 's32[2]{0}', space=sflag, size = 0x8, scoped, tag = 'scoped memory for _lambda_.1']
    %8 = vsyncpa [#allocation5], 0
    loop: start=0, step=1, limit=6
    $region2: #{_lambda_.1} parent=1 // loop_pre_header
      _
    $region3: #{_lambda_.1} parent=1 // loop_header
      %s10 = sphi 0, %s14
      %p11 = scmp.ge.s32.totalorder %s10, 6
      %s17 = sphi 0, %s29
      %s18 = sphi 0, %s25
      %s19 = sphi 0, %s17
      %s20 = sphi 0, %s18
      %s21 = sphi 0, %s19
      %s22 = sphi 0, %s20
      %s34 = sphi 0, %s36
      %s37 = sphi 0, %s34
      %s38 = sphi 0, %s37
      %s54 = sphi 0, %s38
      %s60 = sphi 0, %s62
      %s63 = sphi 0, %s60
      %s64 = sphi 0, %s63
      %s80 = sphi 0, %s64
      %s84 = sphi 0, %s84
      %s86 = sphi 0, %s84
      %s87 = sphi 0, %s86
      %s101 = sphi 0, %s87
      %s107 = sphi 0, %s109
      %s110 = sphi 0, %s107
      %s111 = sphi 0, %s110
      %s127 = sphi 0, %s111
    $region4: #{_lambda_.1} parent=1 // loop_header_branch
      %13 = sbr.rel (%p11) target = $region8
    $region5: #{_lambda_.1} parent=1 // loop_body
      %s15 = ssub.s32 %s10, 1
      %s16 = ssub.s32 %s10, 2
      %s23 = sadd.s32 1, %s18
      %p24 = scmp.ge.s32.totalorder %s23, 4
      %s25 = scalar_select %p24, 0, %s23
      %s26 = sadd.s32 1, %s17
      %s27 = scalar_select %p24, %s26, %s17
      %p28 = scmp.ge.s32.totalorder %s27, 1
      %s29 = scalar_select %p28, 0, %s27
      %s30 = ssub.s32 %s17, %s29
      %s31 = ssub.s32 %s18, %s25
      %s32 = sor.u32 %s30, %s31
      %p33 = scmp.eq.s32.totalorder %s32, 0
      %s35 = sadd.s32 %s34, 1
      %s36 = scalar_select %p33, %s34, %s35
      %p39 = pneg %p33
      %p40 = scmp.eq.s32.totalorder %s10, 3
      %p41 = por %p39, %p40
      %p42 = scmp.ne.s32.totalorder %s34, %s37
      %p43 = scmp.eq.s32.totalorder %s10, 0
      %p44 = por %p42, %p43
      %p45 = scmp.ne.s32.totalorder %s34, %s37
      %p46 = scmp.eq.s32.totalorder %s15, 3
      %p47 = por %p45, %p46
      %p48 = scmp.ne.s32.totalorder %s37, %s38
      %p49 = scmp.eq.s32.totalorder %s15, 0
      %p50 = por %p48, %p49
      %p51 = scmp.ne.s32.totalorder %s37, %s38
      %p52 = scmp.eq.s32.totalorder %s16, 3
      %p53 = por %p51, %p52
      %p55 = scmp.ne.s32.totalorder %s38, %s54
      %p56 = scmp.eq.s32.totalorder %s16, 0
      %p57 = por %p55, %p56
      %s58 = ssub.s32 %s18, %s25
      %p59 = scmp.eq.s32.totalorder %s58, 0
      %s61 = sadd.s32 %s60, 1
      %s62 = scalar_select %p59, %s60, %s61
      %p65 = pneg %p59
      %p66 = scmp.eq.s32.totalorder %s10, 3
      %p67 = por %p65, %p66
      %p68 = scmp.ne.s32.totalorder %s60, %s63
      %p69 = scmp.eq.s32.totalorder %s10, 0
      %p70 = por %p68, %p69
      %p71 = scmp.ne.s32.totalorder %s60, %s63
      %p72 = scmp.eq.s32.totalorder %s15, 3
      %p73 = por %p71, %p72
      %p74 = scmp.ne.s32.totalorder %s63, %s64
      %p75 = scmp.eq.s32.totalorder %s15, 0
      %p76 = por %p74, %p75
      %p77 = scmp.ne.s32.totalorder %s63, %s64
      %p78 = scmp.eq.s32.totalorder %s16, 3
      %p79 = por %p77, %p78
      %p81 = scmp.ne.s32.totalorder %s64, %s80
      %p82 = scmp.eq.s32.totalorder %s16, 0
      %p83 = por %p81, %p82
      %s85 = sadd.s32 %s84, 1
      %p88 = scmp.eq.s32.totalorder %s10, 3
      %p89 = scmp.ne.s32.totalorder %s84, %s86
      %p90 = scmp.eq.s32.totalorder %s10, 0
      %p91 = por %p89, %p90
      %p92 = scmp.ne.s32.totalorder %s84, %s86
      %p93 = scmp.eq.s32.totalorder %s15, 3
      %p94 = por %p92, %p93
      %p95 = scmp.ne.s32.totalorder %s86, %s87
      %p96 = scmp.eq.s32.totalorder %s15, 0
      %p97 = por %p95, %p96
      %p98 = scmp.ne.s32.totalorder %s86, %s87
      %p99 = scmp.eq.s32.totalorder %s16, 3
      %p100 = por %p98, %p99
      %p102 = scmp.ne.s32.totalorder %s87, %s101
      %p103 = scmp.eq.s32.totalorder %s16, 0
      %p104 = por %p102, %p103
      %s105 = ssub.s32 %s17, %s29
      %p106 = scmp.eq.s32.totalorder %s105, 0
      %s108 = sadd.s32 %s107, 1
      %s109 = scalar_select %p106, %s107, %s108
      %p112 = pneg %p106
      %p113 = scmp.eq.s32.totalorder %s10, 3
      %p114 = por %p112, %p113
      %p115 = scmp.ne.s32.totalorder %s107, %s110
      %p116 = scmp.eq.s32.totalorder %s10, 0
      %p117 = por %p115, %p116
      %p118 = scmp.ne.s32.totalorder %s107, %s110
      %p119 = scmp.eq.s32.totalorder %s15, 3
      %p120 = por %p118, %p119
      %p121 = scmp.ne.s32.totalorder %s110, %s111
      %p122 = scmp.eq.s32.totalorder %s15, 0
      %p123 = por %p121, %p122
      %p124 = scmp.ne.s32.totalorder %s110, %s111
      %p125 = scmp.eq.s32.totalorder %s16, 3
      %p126 = por %p124, %p125
      %p128 = scmp.ne.s32.totalorder %s111, %s127
      %p129 = scmp.eq.s32.totalorder %s16, 0
      %p130 = por %p128, %p129
      %p131 = scmp.le.s32.totalorder 1, %s10
      %p132 = scmp.lt.s32.totalorder %s10, 5
      %p133 = pnand %p131, %p132
      %p134 = pneg %p133
      // Predicated region
      $region9: #{_lambda_.1} parent=5 // pred_check
        _
      $region10: #{_lambda_.1} parent=5 // pred_check_branch
        %136 = sbr.rel (%p133) target = $region12
      $region11: #{_lambda_.1} parent=5 // pred_region
        %s137 = ssub.s32 %s10, 1
        // Predicated region
        $region13: #{_lambda_.1} parent=11 // pred_check
          %p138 = pneg %p97
        $region14: #{_lambda_.1} parent=11 // pred_check_branch
          %140 = sbr.rel (%p138) target = $region16
        $region15: #{_lambda_.1} parent=11 // pred_region
          _
        $region16: #{_lambda_.1} parent=11 // pred_fallthru
          _
      $region12: #{_lambda_.1} parent=5 // pred_fallthru
        _
      %p141 = scmp.lt.s32.totalorder %s10, 4
      // Predicated region
      $region17: #{_lambda_.1} parent=5 // pred_check
        %p142 = pneg %p141
      $region18: #{_lambda_.1} parent=5 // pred_check_branch
        %144 = sbr.rel (%p142) target = $region20
      $region19: #{_lambda_.1} parent=5 // pred_region
        // Predicated region
        $region21: #{_lambda_.1} parent=19 // pred_check
          %p145 = pneg %p44
        $region22: #{_lambda_.1} parent=19 // pred_check_branch
          %147 = sbr.rel (%p145) target = $region24
        $region23: #{_lambda_.1} parent=19 // pred_region
          %s148 = sand.u32 %s34, 1
          %s149 = sand.u32 %s34, 1
          %s150 = smul.addr %s149, 128
          %s151 = scalar_lea.vmem [#allocation3], %s150
          %s152 = smul.u32 8, %s17
          %s153 = smul.u32 4, %s18
          %s154 = smul.addr %s152, 16
          %s155 = sadd.s32 %s153, %s154
          %s156 = smul.addr %s155, 4
          %s157 = scalar_lea.vmem %s0, %s156
          // Predicated region
          $region25: #{_lambda_.1} parent=23 // pred_check
            _
          $region26: #{_lambda_.1} parent=23 // pred_check_branch
            %159 = sbr.rel (0) target = $region28
          $region27: #{_lambda_.1} parent=23 // pred_region
            // Predicated region
            $region29: #{_lambda_.1} parent=27 // pred_check
              _
            $region30: #{_lambda_.1} parent=27 // pred_check_branch
              %161 = sbr.rel (0) target = $region32
            $region31: #{_lambda_.1} parent=27 // pred_region
              loop: start=0, step=1, limit=1
              $region33: #{_lambda_.1} parent=31 // loop_pre_header
                _
              $region34: #{_lambda_.1} parent=31 // loop_header
                %s163 = sphi 0, %s167
                %p164 = scmp.ge.s32.totalorder %s163, 1
                %s168 = sphi %s157, %s157
                %s169 = sphi %s151, %s151
              $region35: #{_lambda_.1} parent=31 // loop_header_branch
                %166 = sbr.rel (%p164) target = $region39
              $region36: #{_lambda_.1} parent=31 // loop_body
                %v170 = vld [vmem:[%s168] sm:$0xff]
                %171 = vst [vmem:[%s169] sm:$0xff] %v170
                %v172 = vld [vmem:[%s168 + $0x8] sm:$0xff]
                %173 = vst [vmem:[%s169 + $0x8] sm:$0xff] %v172
                %v174 = vld [vmem:[%s168 + $0x40] sm:$0xff]
                %175 = vst [vmem:[%s169 + $0x10] sm:$0xff] %v174
                %v176 = vld [vmem:[%s168 + $0x48] sm:$0xff]
                %177 = vst [vmem:[%s169 + $0x18] sm:$0xff] %v176
                %v178 = vld [vmem:[%s168 + $0x80] sm:$0xff]
                %179 = vst [vmem:[%s169 + $0x20] sm:$0xff] %v178
                %v180 = vld [vmem:[%s168 + $0x88] sm:$0xff]
                %181 = vst [vmem:[%s169 + $0x28] sm:$0xff] %v180
                %v182 = vld [vmem:[%s168 + $0xc0] sm:$0xff]
                %183 = vst [vmem:[%s169 + $0x30] sm:$0xff] %v182
                %v184 = vld [vmem:[%s168 + $0xc8] sm:$0xff]
                %185 = vst [vmem:[%s169 + $0x38] sm:$0xff] %v184
                %v186 = vld [vmem:[%s168 + $0x100] sm:$0xff]
                %187 = vst [vmem:[%s169 + $0x40] sm:$0xff] %v186
                %v188 = vld [vmem:[%s168 + $0x108] sm:$0xff]
                %189 = vst [vmem:[%s169 + $0x48] sm:$0xff] %v188
                %v190 = vld [vmem:[%s168 + $0x140] sm:$0xff]
                %191 = vst [vmem:[%s169 + $0x50] sm:$0xff] %v190
                %v192 = vld [vmem:[%s168 + $0x148] sm:$0xff]
                %193 = vst [vmem:[%s169 + $0x58] sm:$0xff] %v192
                %v194 = vld [vmem:[%s168 + $0x180] sm:$0xff]
                %195 = vst [vmem:[%s169 + $0x60] sm:$0xff] %v194
                %v196 = vld [vmem:[%s168 + $0x188] sm:$0xff]
                %197 = vst [vmem:[%s169 + $0x68] sm:$0xff] %v196
                %v198 = vld [vmem:[%s168 + $0x1c0] sm:$0xff]
                %199 = vst [vmem:[%s169 + $0x70] sm:$0xff] %v198
                %v200 = vld [vmem:[%s168 + $0x1c8] sm:$0xff]
                %201 = vst [vmem:[%s169 + $0x78] sm:$0xff] %v200
              $region37: #{_lambda_.1} parent=31 // loop_footer
                %s167 = sadd.s32 1, %s163
              $region38: #{_lambda_.1} parent=31 // loop_footer_branch
                %162 = sbr.rel target = $region34
              $region39: #{_lambda_.1} parent=31 // loop_exit
                _
            $region32: #{_lambda_.1} parent=27 // pred_fallthru
              _
            // Predicated region
            $region40: #{_lambda_.1} parent=27 // pred_check
              _
            $region41: #{_lambda_.1} parent=27 // pred_check_branch
              %203 = sbr.rel target = $region43
            $region42: #{_lambda_.1} parent=27 // pred_region
              _
            $region43: #{_lambda_.1} parent=27 // pred_fallthru
              _
          $region28: #{_lambda_.1} parent=23 // pred_fallthru
            _
          %204 = vnop
        $region24: #{_lambda_.1} parent=19 // pred_fallthru
          _
        // Predicated region
        $region44: #{_lambda_.1} parent=19 // pred_check
          %p205 = pneg %p70
        $region45: #{_lambda_.1} parent=19 // pred_check_branch
          %207 = sbr.rel (%p205) target = $region47
        $region46: #{_lambda_.1} parent=19 // pred_region
          %s208 = smul.u32 64, %s18
          %p209 = scmp.lt.s32.totalorder %s208, 255
          %s210 = scalar_select %p209, %s208, 255
          %s211 = smul.addr %s210, 4
          %s212 = scalar_lea.vmem %s1, %s211
          %s213 = smul.u32 64, %s18
        $region47: #{_lambda_.1} parent=19 // pred_fallthru
          _
      $region20: #{_lambda_.1} parent=5 // pred_fallthru
        _
      %p214 = scmp.le.s32.totalorder 1, %s10
      %p215 = scmp.lt.s32.totalorder %s10, 5
      %p216 = pnand %p214, %p215
      %p217 = pneg %p216
      // Predicated region
      $region48: #{_lambda_.1} parent=5 // pred_check
        _
      $region49: #{_lambda_.1} parent=5 // pred_check_branch
        %219 = sbr.rel (%p216) target = $region51
      $region50: #{_lambda_.1} parent=5 // pred_region
        %s220 = ssub.s32 %s10, 1
        %s221 = sand.u32 %s37, 1
        %s222 = sand.u32 %s37, 1
        %s223 = smul.addr %s222, 128
        %s224 = scalar_lea.vmem [#allocation3], %s223
        // Predicated region
        $region52: #{_lambda_.1} parent=50 // pred_check
          %p225 = pneg %p50
        $region53: #{_lambda_.1} parent=50 // pred_check_branch
          %227 = sbr.rel (%p225) target = $region55
        $region54: #{_lambda_.1} parent=50 // pred_region
          _
        $region55: #{_lambda_.1} parent=50 // pred_fallthru
          _
        %s228 = sand.u32 %s37, 1
        %s229 = sand.u32 %s37, 1
        %s230 = smul.addr %s229, 128
        %s231 = scalar_lea.vmem [#allocation3], %s230
        %p232 = pneg %p50
        %p233 = pneg %p47
        %s234 = smul.u32 64, %s20
        %p235 = scmp.lt.s32.totalorder %s234, 255
        %s236 = scalar_select %p235, %s234, 255
        %s237 = smul.addr %s236, 4
        %s238 = scalar_lea.vmem %s1, %s237
        %p239 = pneg %p76
        %p240 = pneg %p73
        %p241 = pneg %p97
        %p242 = pneg %p94
        %p243 = pneg %p123
        %p244 = pneg %p120
        %s245 = smul.u32 8, %s19
        %s246 = smul.u32 4, %s20
        %s247 = smul.u32 64, %s20
        %p248 = scmp.lt.s32.totalorder %s247, 255
        %s249 = scalar_select %p248, %s247, 255
        %s250 = smul.addr %s249, 4
        %s251 = scalar_lea.vmem %s1, %s250
        %s252 = smul.u32 64, %s20
        %s253 = smul.u32 8, %s19
        %p255 = scmp.eq.s32.totalorder %s20, 0
        // Predicated region
        $region56: #{_lambda_.1} parent=50 // pred_check
          %p256 = pneg %p255
        $region57: #{_lambda_.1} parent=50 // pred_check_branch
          %258 = sbr.rel (%p256) target = $region59
        $region58: #{_lambda_.1} parent=50 // pred_region
          %vm259 = vcmask 818176
          %260 = vst.msk [vmem:[#allocation2] sm:$0xff] %vm259, 0.0
          %261 = vst.msk [vmem:[#allocation2 + $0x8] sm:$0xff] %vm259, 0.0
          %262 = vst.msk [vmem:[#allocation2 + $0x10] sm:$0xff] %vm259, 0.0
          %263 = vst.msk [vmem:[#allocation2 + $0x18] sm:$0xff] %vm259, 0.0
          %264 = vst.msk [vmem:[#allocation2 + $0x20] sm:$0xff] %vm259, 0.0
          %265 = vst.msk [vmem:[#allocation2 + $0x28] sm:$0xff] %vm259, 0.0
          %266 = vst.msk [vmem:[#allocation2 + $0x30] sm:$0xff] %vm259, 0.0
          %267 = vst.msk [vmem:[#allocation2 + $0x38] sm:$0xff] %vm259, 0.0
        $region59: #{_lambda_.1} parent=50 // pred_fallthru
          _
        %v268 = vld [vmem:[#allocation2] sm:$0xff]
        %v269 = vld [vmem:[#allocation2 + $0x8] sm:$0xff]
        %v270 = vld [vmem:[#allocation2 + $0x10] sm:$0xff]
        %v271 = vld [vmem:[#allocation2 + $0x18] sm:$0xff]
        %v272 = vld [vmem:[#allocation2 + $0x20] sm:$0xff]
        %v273 = vld [vmem:[#allocation2 + $0x28] sm:$0xff]
        %v274 = vld [vmem:[#allocation2 + $0x30] sm:$0xff]
        %v275 = vld [vmem:[#allocation2 + $0x38] sm:$0xff]
        %v276 = vld [vmem:[%s224] sm:$0xff]
        %v277 = vld [vmem:[%s224 + $0x8] sm:$0xff]
        %v278 = vld [vmem:[%s224 + $0x10] sm:$0xff]
        %v279 = vld [vmem:[%s224 + $0x18] sm:$0xff]
        %v280 = vld [vmem:[%s224 + $0x20] sm:$0xff]
        %v281 = vld [vmem:[%s224 + $0x28] sm:$0xff]
        %v282 = vld [vmem:[%s224 + $0x30] sm:$0xff]
        %v283 = vld [vmem:[%s224 + $0x38] sm:$0xff]
        %v284 = vld [vmem:[%s224 + $0x40] sm:$0xff]
        %v285 = vld [vmem:[%s224 + $0x48] sm:$0xff]
        %v286 = vld [vmem:[%s224 + $0x50] sm:$0xff]
        %v287 = vld [vmem:[%s224 + $0x58] sm:$0xff]
        %v288 = vld [vmem:[%s224 + $0x60] sm:$0xff]
        %v289 = vld [vmem:[%s224 + $0x68] sm:$0xff]
        %v290 = vld [vmem:[%s224 + $0x70] sm:$0xff]
        %v291 = vld [vmem:[%s224 + $0x78] sm:$0xff]
        %v292 = vld [vmem:[%s251] sm:$0xf]
        %v293 = vld [vmem:[%s251 + $0x4] sm:$0xf]
        %v294 = vld [vmem:[%s251 + $0x8] sm:$0xf]
        %v295 = vld [vmem:[%s251 + $0xc] sm:$0xf]
        %v296 = vld [vmem:[%s251 + $0x10] sm:$0xf]
        %v297 = vld [vmem:[%s251 + $0x14] sm:$0xf]
        %v298 = vld [vmem:[%s251 + $0x18] sm:$0xf]
        %v299 = vld [vmem:[%s251 + $0x1c] sm:$0xf]
        %v300 = vld [vmem:[%s251 + $0x20] sm:$0xf]
        %v301 = vld [vmem:[%s251 + $0x24] sm:$0xf]
        %v302 = vld [vmem:[%s251 + $0x28] sm:$0xf]
        %v303 = vld [vmem:[%s251 + $0x2c] sm:$0xf]
        %v304 = vld [vmem:[%s251 + $0x30] sm:$0xf]
        %v305 = vld [vmem:[%s251 + $0x34] sm:$0xf]
        %v306 = vld [vmem:[%s251 + $0x38] sm:$0xf]
        %v307 = vld [vmem:[%s251 + $0x3c] sm:$0xf]
        %v308 = vld [vmem:[%s251 + $0x40] sm:$0xf]
        %v309 = vld [vmem:[%s251 + $0x44] sm:$0xf]
        %v310 = vld [vmem:[%s251 + $0x48] sm:$0xf]
        %v311 = vld [vmem:[%s251 + $0x4c] sm:$0xf]
        %v312 = vld [vmem:[%s251 + $0x50] sm:$0xf]
        %v313 = vld [vmem:[%s251 + $0x54] sm:$0xf]
        %v314 = vld [vmem:[%s251 + $0x58] sm:$0xf]
        %v315 = vld [vmem:[%s251 + $0x5c] sm:$0xf]
        %v316 = vld [vmem:[%s251 + $0x60] sm:$0xf]
        %v317 = vld [vmem:[%s251 + $0x64] sm:$0xf]
        %v318 = vld [vmem:[%s251 + $0x68] sm:$0xf]
        %v319 = vld [vmem:[%s251 + $0x6c] sm:$0xf]
        %v320 = vld [vmem:[%s251 + $0x70] sm:$0xf]
        %v321 = vld [vmem:[%s251 + $0x74] sm:$0xf]
        %v322 = vld [vmem:[%s251 + $0x78] sm:$0xf]
        %v323 = vld [vmem:[%s251 + $0x7c] sm:$0xf]
        %v324 = vld [vmem:[%s251 + $0x80] sm:$0xf]
        %v325 = vld [vmem:[%s251 + $0x84] sm:$0xf]
        %v326 = vld [vmem:[%s251 + $0x88] sm:$0xf]
        %v327 = vld [vmem:[%s251 + $0x8c] sm:$0xf]
        %v328 = vld [vmem:[%s251 + $0x90] sm:$0xf]
        %v329 = vld [vmem:[%s251 + $0x94] sm:$0xf]
        %v330 = vld [vmem:[%s251 + $0x98] sm:$0xf]
        %v331 = vld [vmem:[%s251 + $0x9c] sm:$0xf]
        %v332 = vld [vmem:[%s251 + $0xa0] sm:$0xf]
        %v333 = vld [vmem:[%s251 + $0xa4] sm:$0xf]
        %v334 = vld [vmem:[%s251 + $0xa8] sm:$0xf]
        %v335 = vld [vmem:[%s251 + $0xac] sm:$0xf]
        %v336 = vld [vmem:[%s251 + $0xb0] sm:$0xf]
        %v337 = vld [vmem:[%s251 + $0xb4] sm:$0xf]
        %v338 = vld [vmem:[%s251 + $0xb8] sm:$0xf]
        %v339 = vld [vmem:[%s251 + $0xbc] sm:$0xf]
        %v340 = vld [vmem:[%s251 + $0xc0] sm:$0xf]
        %v341 = vld [vmem:[%s251 + $0xc4] sm:$0xf]
        %v342 = vld [vmem:[%s251 + $0xc8] sm:$0xf]
        %v343 = vld [vmem:[%s251 + $0xcc] sm:$0xf]
        %v344 = vld [vmem:[%s251 + $0xd0] sm:$0xf]
        %v345 = vld [vmem:[%s251 + $0xd4] sm:$0xf]
        %v346 = vld [vmem:[%s251 + $0xd8] sm:$0xf]
        %v347 = vld [vmem:[%s251 + $0xdc] sm:$0xf]
        %v348 = vld [vmem:[%s251 + $0xe0] sm:$0xf]
        %v349 = vld [vmem:[%s251 + $0xe4] sm:$0xf]
        %v350 = vld [vmem:[%s251 + $0xe8] sm:$0xf]
        %v351 = vld [vmem:[%s251 + $0xec] sm:$0xf]
        %v352 = vld [vmem:[%s251 + $0xf0] sm:$0xf]
        %v353 = vld [vmem:[%s251 + $0xf4] sm:$0xf]
        %v354 = vld [vmem:[%s251 + $0xf8] sm:$0xf]
        %v355 = vld [vmem:[%s251 + $0xfc] sm:$0xf]
        %v372 = vunpack.c.l.b16 %v276
        %v373 = vunpack.c.h.b16 %v276
        %v374 = vunpack.c.l.b16 %v277
        %v375 = vunpack.c.h.b16 %v277
        %v376 = vunpack.c.l.b16 %v278
        %v377 = vunpack.c.h.b16 %v278
        %v378 = vunpack.c.l.b16 %v279
        %v379 = vunpack.c.h.b16 %v279
        %v380 = vunpack.c.l.b16 %v280
        %v381 = vunpack.c.h.b16 %v280
        %v382 = vunpack.c.l.b16 %v281
        %v383 = vunpack.c.h.b16 %v281
        %v384 = vunpack.c.l.b16 %v282
        %v385 = vunpack.c.h.b16 %v282
        %v386 = vunpack.c.l.b16 %v283
        %v387 = vunpack.c.h.b16 %v283
        %v388 = vunpack.c.l.b16 %v284
        %v389 = vunpack.c.h.b16 %v284
        %v390 = vunpack.c.l.b16 %v285
        %v391 = vunpack.c.h.b16 %v285
        %v392 = vunpack.c.l.b16 %v286
        %v393 = vunpack.c.h.b16 %v286
        %v394 = vunpack.c.l.b16 %v287
        %v395 = vunpack.c.h.b16 %v287
        %v396 = vunpack.c.l.b16 %v288
        %v397 = vunpack.c.h.b16 %v288
        %v398 = vunpack.c.l.b16 %v289
        %v399 = vunpack.c.h.b16 %v289
        %v400 = vunpack.c.l.b16 %v290
        %v401 = vunpack.c.h.b16 %v290
        %v402 = vunpack.c.l.b16 %v291
        %v403 = vunpack.c.h.b16 %v291
        %v404 = vpack.c.b16 %v376, %v372
        %v405 = vpack.c.b16 %v377, %v373
        %v406 = vpack.c.b16 %v378, %v374
        %v407 = vpack.c.b16 %v379, %v375
        %v408 = vpack.c.b16 %v384, %v380
        %v409 = vpack.c.b16 %v385, %v381
        %v410 = vpack.c.b16 %v386, %v382
        %v411 = vpack.c.b16 %v387, %v383
        %v412 = vpack.c.b16 %v392, %v388
        %v413 = vpack.c.b16 %v393, %v389
        %v414 = vpack.c.b16 %v394, %v390
        %v415 = vpack.c.b16 %v395, %v391
        %v416 = vpack.c.b16 %v400, %v396
        %v417 = vpack.c.b16 %v401, %v397
        %v418 = vpack.c.b16 %v402, %v398
        %v419 = vpack.c.b16 %v403, %v399
        %v500 = vunpack.c.l.b16 %v292
        %v501 = vunpack.c.l.b16 %v293
        %v502 = vunpack.c.l.b16 %v294
        %v503 = vunpack.c.l.b16 %v295
        %v504 = vunpack.c.l.b16 %v296
        %v505 = vunpack.c.l.b16 %v297
        %v506 = vunpack.c.l.b16 %v298
        %v507 = vunpack.c.l.b16 %v299
        %v508 = vunpack.c.l.b16 %v300
        %v509 = vunpack.c.l.b16 %v301
        %v510 = vunpack.c.l.b16 %v302
        %v511 = vunpack.c.l.b16 %v303
        %v512 = vunpack.c.l.b16 %v304
        %v513 = vunpack.c.l.b16 %v305
        %v514 = vunpack.c.l.b16 %v306
        %v515 = vunpack.c.l.b16 %v307
        %v516 = vunpack.c.l.b16 %v308
        %v517 = vunpack.c.l.b16 %v309
        %v518 = vunpack.c.l.b16 %v310
        %v519 = vunpack.c.l.b16 %v311
        %v520 = vunpack.c.l.b16 %v312
        %v521 = vunpack.c.l.b16 %v313
        %v522 = vunpack.c.l.b16 %v314
        %v523 = vunpack.c.l.b16 %v315
        %v524 = vunpack.c.l.b16 %v316
        %v525 = vunpack.c.l.b16 %v317
        %v526 = vunpack.c.l.b16 %v318
        %v527 = vunpack.c.l.b16 %v319
        %v528 = vunpack.c.l.b16 %v320
        %v529 = vunpack.c.l.b16 %v321
        %v530 = vunpack.c.l.b16 %v322
        %v531 = vunpack.c.l.b16 %v323
        %v532 = vunpack.c.l.b16 %v324
        %v533 = vunpack.c.l.b16 %v325
        %v534 = vunpack.c.l.b16 %v326
        %v535 = vunpack.c.l.b16 %v327
        %v536 = vunpack.c.l.b16 %v328
        %v537 = vunpack.c.l.b16 %v329
        %v538 = vunpack.c.l.b16 %v330
        %v539 = vunpack.c.l.b16 %v331
        %v540 = vunpack.c.l.b16 %v332
        %v541 = vunpack.c.l.b16 %v333
        %v542 = vunpack.c.l.b16 %v334
        %v543 = vunpack.c.l.b16 %v335
        %v544 = vunpack.c.l.b16 %v336
        %v545 = vunpack.c.l.b16 %v337
        %v546 = vunpack.c.l.b16 %v338
        %v547 = vunpack.c.l.b16 %v339
        %v548 = vunpack.c.l.b16 %v340
        %v549 = vunpack.c.l.b16 %v341
        %v550 = vunpack.c.l.b16 %v342
        %v551 = vunpack.c.l.b16 %v343
        %v552 = vunpack.c.l.b16 %v344
        %v553 = vunpack.c.l.b16 %v345
        %v554 = vunpack.c.l.b16 %v346
        %v555 = vunpack.c.l.b16 %v347
        %v556 = vunpack.c.l.b16 %v348
        %v557 = vunpack.c.l.b16 %v349
        %v558 = vunpack.c.l.b16 %v350
        %v559 = vunpack.c.l.b16 %v351
        %v560 = vunpack.c.l.b16 %v352
        %v561 = vunpack.c.l.b16 %v353
        %v562 = vunpack.c.l.b16 %v354
        %v563 = vunpack.c.l.b16 %v355
        %v564 = vpack.c.b16 %v501, %v500
        %v565 = vpack.c.b16 %v503, %v502
        %v566 = vpack.c.b16 %v505, %v504
        %v567 = vpack.c.b16 %v507, %v506
        %v568 = vpack.c.b16 %v509, %v508
        %v569 = vpack.c.b16 %v511, %v510
        %v570 = vpack.c.b16 %v513, %v512
        %v571 = vpack.c.b16 %v515, %v514
        %v572 = vpack.c.b16 %v517, %v516
        %v573 = vpack.c.b16 %v519, %v518
        %v574 = vpack.c.b16 %v521, %v520
        %v575 = vpack.c.b16 %v523, %v522
        %v576 = vpack.c.b16 %v525, %v524
        %v577 = vpack.c.b16 %v527, %v526
        %v578 = vpack.c.b16 %v529, %v528
        %v579 = vpack.c.b16 %v531, %v530
        %v580 = vpack.c.b16 %v533, %v532
        %v581 = vpack.c.b16 %v535, %v534
        %v582 = vpack.c.b16 %v537, %v536
        %v583 = vpack.c.b16 %v539, %v538
        %v584 = vpack.c.b16 %v541, %v540
        %v585 = vpack.c.b16 %v543, %v542
        %v586 = vpack.c.b16 %v545, %v544
        %v587 = vpack.c.b16 %v547, %v546
        %v588 = vpack.c.b16 %v549, %v548
        %v589 = vpack.c.b16 %v551, %v550
        %v590 = vpack.c.b16 %v553, %v552
        %v591 = vpack.c.b16 %v555, %v554
        %v592 = vpack.c.b16 %v557, %v556
        %v593 = vpack.c.b16 %v559, %v558
        %v594 = vpack.c.b16 %v561, %v560
        %v595 = vpack.c.b16 %v563, %v562
        %628 = vmatprep.subr.bf16.mxu0 0
        %629 = vmatpush1.bf16.msra.mxu0 %v564
        %630 = vmatprep.subr.bf16.mxu0 0
        %631 = vmatpush1.bf16.msra.mxu0 %v565
        %632 = vmatprep.subr.bf16.mxu0 0
        %633 = vmatpush1.bf16.msra.mxu0 %v566
        %634 = vmatprep.subr.bf16.mxu0 0
        %635 = vmatpush1.bf16.msra.mxu0 %v567
        %636 = vmatprep.subr.bf16.mxu0 0
        %637 = vmatpush1.bf16.msra.mxu0 %v568
        %638 = vmatprep.subr.bf16.mxu0 0
        %639 = vmatpush1.bf16.msra.mxu0 %v569
        %640 = vmatprep.subr.bf16.mxu0 0
        %641 = vmatpush1.bf16.msra.mxu0 %v570
        %642 = vmatprep.subr.bf16.mxu0 0
        %643 = vmatpush1.bf16.msra.mxu0 %v571
        %644 = vmatprep.subr.bf16.mxu0 0
        %645 = vmatpush1.bf16.msra.mxu0 %v572
        %646 = vmatprep.subr.bf16.mxu0 0
        %647 = vmatpush1.bf16.msra.mxu0 %v573
        %648 = vmatprep.subr.bf16.mxu0 0
        %649 = vmatpush1.bf16.msra.mxu0 %v574
        %650 = vmatprep.subr.bf16.mxu0 0
        %651 = vmatpush1.bf16.msra.mxu0 %v575
        %652 = vmatprep.subr.bf16.mxu0 0
        %653 = vmatpush1.bf16.msra.mxu0 %v576
        %654 = vmatprep.subr.bf16.mxu0 0
        %655 = vmatpush1.bf16.msra.mxu0 %v577
        %656 = vmatprep.subr.bf16.mxu0 0
        %657 = vmatpush1.bf16.msra.mxu0 %v578
        %658 = vmatprep.subr.bf16.mxu0 0
        %659 = vmatpush1.bf16.msra.mxu0 %v579
        %660 = vmatprep.mubr.bf16.mxu0 %v405
        %661 = vmatmul.mubr.bf16.gmra.mrb[0].mxu0 %v404
        %v662 = vpop.f32.mrb[0].mxu0
        %v663 = vadd.f32 0.0, %v662
        %v664 = vpop.f32.mrb[0].mxu0
        %v665 = vpop.f32.mrb[0].mxu0
        %v666 = vadd.f32 0.0, %v665
        %v667 = vpop.f32.mrb[0].mxu0
        %668 = vmatprep.mubr.bf16.mxu0 %v409
        %669 = vmatmul.mubr.bf16.gmra.mrb[0].mxu0 %v408
        %v670 = vpop.f32.mrb[0].mxu0
        %v671 = vadd.f32 0.0, %v670
        %v672 = vpop.f32.mrb[0].mxu0
        %v673 = vpop.f32.mrb[0].mxu0
        %v674 = vadd.f32 0.0, %v673
        %v675 = vpop.f32.mrb[0].mxu0
        %676 = vmatprep.mubr.bf16.mxu0 %v413
        %677 = vmatmul.mubr.bf16.gmra.mrb[0].mxu0 %v412
        %v678 = vpop.f32.mrb[0].mxu0
        %v679 = vadd.f32 0.0, %v678
        %v680 = vpop.f32.mrb[0].mxu0
        %v681 = vpop.f32.mrb[0].mxu0
        %v682 = vadd.f32 0.0, %v681
        %v683 = vpop.f32.mrb[0].mxu0
        %684 = vmatprep.mubr.bf16.mxu0 %v417
        %685 = vmatmul.mubr.bf16.gmra.mrb[0].mxu0 %v416
        %v686 = vpop.f32.mrb[0].mxu0
        %v687 = vadd.f32 0.0, %v686
        %v688 = vpop.f32.mrb[0].mxu0
        %v689 = vpop.f32.mrb[0].mxu0
        %v690 = vadd.f32 0.0, %v689
        %v691 = vpop.f32.mrb[0].mxu0
        %692 = vdwg.mxu0
        %693 = vmatprep.subr.bf16.mxu0 0
        %694 = vmatpush1.bf16.msra.mxu0 %v580
        %695 = vmatprep.subr.bf16.mxu0 0
        %696 = vmatpush1.bf16.msra.mxu0 %v581
        %697 = vmatprep.subr.bf16.mxu0 0
        %698 = vmatpush1.bf16.msra.mxu0 %v582
        %699 = vmatprep.subr.bf16.mxu0 0
        %700 = vmatpush1.bf16.msra.mxu0 %v583
        %701 = vmatprep.subr.bf16.mxu0 0
        %702 = vmatpush1.bf16.msra.mxu0 %v584
        %703 = vmatprep.subr.bf16.mxu0 0
        %704 = vmatpush1.bf16.msra.mxu0 %v585
        %705 = vmatprep.subr.bf16.mxu0 0
        %706 = vmatpush1.bf16.msra.mxu0 %v586
        %707 = vmatprep.subr.bf16.mxu0 0
        %708 = vmatpush1.bf16.msra.mxu0 %v587
        %709 = vmatprep.subr.bf16.mxu0 0
        %710 = vmatpush1.bf16.msra.mxu0 %v588
        %711 = vmatprep.subr.bf16.mxu0 0
        %712 = vmatpush1.bf16.msra.mxu0 %v589
        %713 = vmatprep.subr.bf16.mxu0 0
        %714 = vmatpush1.bf16.msra.mxu0 %v590
        %715 = vmatprep.subr.bf16.mxu0 0
        %716 = vmatpush1.bf16.msra.mxu0 %v591
        %717 = vmatprep.subr.bf16.mxu0 0
        %718 = vmatpush1.bf16.msra.mxu0 %v592
        %719 = vmatprep.subr.bf16.mxu0 0
        %720 = vmatpush1.bf16.msra.mxu0 %v593
        %721 = vmatprep.subr.bf16.mxu0 0
        %722 = vmatpush1.bf16.msra.mxu0 %v594
        %723 = vmatprep.subr.bf16.mxu0 0
        %724 = vmatpush1.bf16.msra.mxu0 %v595
        %725 = vmatprep.mubr.bf16.mxu0 %v407
        %726 = vmatmul.mubr.bf16.gmra.mrb[0].mxu0 %v406
        %v727 = vpop.f32.mrb[0].mxu0
        %v728 = vadd.f32 %v663, %v727
        %v729 = vpop.f32.mrb[0].mxu0
        %v730 = vpop.f32.mrb[0].mxu0
        %v731 = vadd.f32 %v666, %v730
        %v732 = vpop.f32.mrb[0].mxu0
        %733 = vmatprep.mubr.bf16.mxu0 %v411
        %734 = vmatmul.mubr.bf16.gmra.mrb[0].mxu0 %v410
        %v735 = vpop.f32.mrb[0].mxu0
        %v736 = vadd.f32 %v671, %v735
        %v737 = vpop.f32.mrb[0].mxu0
        %v738 = vpop.f32.mrb[0].mxu0
        %v739 = vadd.f32 %v674, %v738
        %v740 = vpop.f32.mrb[0].mxu0
        %741 = vmatprep.mubr.bf16.mxu0 %v415
        %742 = vmatmul.mubr.bf16.gmra.mrb[0].mxu0 %v414
        %v743 = vpop.f32.mrb[0].mxu0
        %v744 = vadd.f32 %v679, %v743
        %v745 = vpop.f32.mrb[0].mxu0
        %v746 = vpop.f32.mrb[0].mxu0
        %v747 = vadd.f32 %v682, %v746
        %v748 = vpop.f32.mrb[0].mxu0
        %749 = vmatprep.mubr.bf16.mxu0 %v419
        %750 = vmatmul.mubr.bf16.gmra.mrb[0].mxu0 %v418
        %v751 = vpop.f32.mrb[0].mxu0
        %v752 = vadd.f32 %v687, %v751
        %v753 = vpop.f32.mrb[0].mxu0
        %v754 = vpop.f32.mrb[0].mxu0
        %v755 = vadd.f32 %v690, %v754
        %v756 = vpop.f32.mrb[0].mxu0
        %757 = vdwg.mxu0
        %v758 = vadd.f32 %v268, %v728
        %v759 = vadd.f32 %v269, %v731
        %v760 = vadd.f32 %v270, %v736
        %v761 = vadd.f32 %v271, %v739
        %v762 = vadd.f32 %v272, %v744
        %v763 = vadd.f32 %v273, %v747
        %v764 = vadd.f32 %v274, %v752
        %v765 = vadd.f32 %v275, %v755
        %vm766 = vcmask 818176
        %767 = vst.msk [vmem:[#allocation2] sm:$0xff] %vm766, %v758
        %768 = vst.msk [vmem:[#allocation2 + $0x8] sm:$0xff] %vm766, %v759
        %769 = vst.msk [vmem:[#allocation2 + $0x10] sm:$0xff] %vm766, %v760
        %770 = vst.msk [vmem:[#allocation2 + $0x18] sm:$0xff] %vm766, %v761
        %771 = vst.msk [vmem:[#allocation2 + $0x20] sm:$0xff] %vm766, %v762
        %772 = vst.msk [vmem:[#allocation2 + $0x28] sm:$0xff] %vm766, %v763
        %773 = vst.msk [vmem:[#allocation2 + $0x30] sm:$0xff] %vm766, %v764
        %774 = vst.msk [vmem:[#allocation2 + $0x38] sm:$0xff] %vm766, %v765
        %p775 = scmp.eq.s32.totalorder %s20, 3
        // Predicated region
        $region60: #{_lambda_.1} parent=50 // pred_check
          %p776 = pneg %p775
        $region61: #{_lambda_.1} parent=50 // pred_check_branch
          %778 = sbr.rel (%p776) target = $region63
        $region62: #{_lambda_.1} parent=50 // pred_region
          %v779 = vld [vmem:[#allocation2] sm:$0xff]
          %v780 = vld [vmem:[#allocation2 + $0x8] sm:$0xff]
          %v781 = vld [vmem:[#allocation2 + $0x10] sm:$0xff]
          %v782 = vld [vmem:[#allocation2 + $0x18] sm:$0xff]
          %v783 = vld [vmem:[#allocation2 + $0x20] sm:$0xff]
          %v784 = vld [vmem:[#allocation2 + $0x28] sm:$0xff]
          %v785 = vld [vmem:[#allocation2 + $0x30] sm:$0xff]
          %v786 = vld [vmem:[#allocation2 + $0x38] sm:$0xff]
          %v787 = vld [vmem:[%s2] sm:$0x1]
          %v789 = vlaneseq
          %v790 = vshrl.u32 %v789, 7
          %v791 = vsub.s32 0, %v790
          %v792 = vrot.slane %v787, %v791
          %v794 = vadd.f32 %v779, %v792
          %v795 = vadd.f32 %v780, %v792
          %v796 = vadd.f32 %v781, %v792
          %v797 = vadd.f32 %v782, %v792
          %v798 = vadd.f32 %v783, %v792
          %v799 = vadd.f32 %v784, %v792
          %v800 = vadd.f32 %v785, %v792
          %v801 = vadd.f32 %v786, %v792
          %v802 = vmax.f32 %v794, 0.0
          %v803 = vmax.f32 %v795, 0.0
          %v804 = vmax.f32 %v796, 0.0
          %v805 = vmax.f32 %v797, 0.0
          %v806 = vmax.f32 %v798, 0.0
          %v807 = vmax.f32 %v799, 0.0
          %v808 = vmax.f32 %v800, 0.0
          %v809 = vmax.f32 %v801, 0.0
          %810 = vst.msk [vmem:[#allocation4] sm:$0xff] %vm766, %v802
          %811 = vst.msk [vmem:[#allocation4 + $0x8] sm:$0xff] %vm766, %v803
          %812 = vst.msk [vmem:[#allocation4 + $0x10] sm:$0xff] %vm766, %v804
          %813 = vst.msk [vmem:[#allocation4 + $0x18] sm:$0xff] %vm766, %v805
          %814 = vst.msk [vmem:[#allocation4 + $0x20] sm:$0xff] %vm766, %v806
          %815 = vst.msk [vmem:[#allocation4 + $0x28] sm:$0xff] %vm766, %v807
          %816 = vst.msk [vmem:[#allocation4 + $0x30] sm:$0xff] %vm766, %v808
          %817 = vst.msk [vmem:[#allocation4 + $0x38] sm:$0xff] %vm766, %v809
        $region63: #{_lambda_.1} parent=50 // pred_fallthru
          _
        // Predicated region
        $region64: #{_lambda_.1} parent=50 // pred_check
          %p818 = pneg %p120
        $region65: #{_lambda_.1} parent=50 // pred_check_branch
          %820 = sbr.rel (%p818) target = $region67
        $region66: #{_lambda_.1} parent=50 // pred_region
          %s821 = smul.u32 8, %s19
          %s823 = ssub.s32 1024, 1024
          %824 = vsyncadd [#allocation5], %s823
          %s825 = smul.addr %s821, 128
          %s826 = scalar_lea.hbm %s3, %s825
          %s827 = sshll.u32 [#allocation4], 4
          %s828 = int_to_ptr.vmem [resolvable:$true] %s827
          %833 = dma.vmem_to_hbm [thread:$0]  %s828, 1024, %s826, [#allocation5], 128, 128, 8
        $region67: #{_lambda_.1} parent=50 // pred_fallthru
          _
        // Predicated region
        $region68: #{_lambda_.1} parent=50 // pred_check
          %p834 = pneg %p120
        $region69: #{_lambda_.1} parent=50 // pred_check_branch
          %836 = sbr.rel (%p834) target = $region71
        $region70: #{_lambda_.1} parent=50 // pred_region
          %837 = dma.done [#allocation5], 1024
        $region71: #{_lambda_.1} parent=50 // pred_fallthru
          _
      $region51: #{_lambda_.1} parent=5 // pred_fallthru
        _
      %p838 = scmp.le.s32.totalorder 2, %s10
      // Predicated region
      $region72: #{_lambda_.1} parent=5 // pred_check
        %p839 = pneg %p838
      $region73: #{_lambda_.1} parent=5 // pred_check_branch
        %841 = sbr.rel (%p839) target = $region75
      $region74: #{_lambda_.1} parent=5 // pred_region
        %s842 = ssub.s32 %s10, 2
      $region75: #{_lambda_.1} parent=5 // pred_fallthru
        _
    $region6: #{_lambda_.1} parent=1 // loop_footer
      %s14 = sadd.s32 1, %s10
    $region7: #{_lambda_.1} parent=1 // loop_footer_branch
      %9 = sbr.rel target = $region3
    $region8: #{_lambda_.1} parent=1 // loop_exit
      _
    %843 = vsyncpa [#allocation5], 1
    %s844 = scalar_lea.sflag [#allocation5], 1
    %845 = vsyncpa %s844, 1

</llo_original>
